<compile_context>
chip_gen: v7x
topology: tpu7x:2x2x1
jax: 0.10.0
libtpu: 0.0.40
codegen_flags: <defaults>
</compile_context>

<pallas_src>
import math

import jax
import jax.numpy as jnp
from jax.experimental import pallas as pl
from jax.experimental.pallas import tpu as pltpu

LEAKY_SLOPE = 0.01          # PyTorch nn.LeakyReLU default negative_slope
BOTTOM_DIM = 300
H1_DIM = 100
H2_DIM = 10
LANE = 128
U_PAD = 384                 # round_up(300, 128): lane-dense passive embeddings
_TM_CANDIDATES = (8, 16, 32, 64, 128, 256, 512)
_STEP_OVERHEAD_ROWS = 128   # ~0.35us per grid step expressed in row-equivalents


def _round_up(n, m):
    return ((n + m - 1) // m) * m


def _leaky(v):
    # Identical to LeakyReLU(slope) for slope in (0,1); vmul+vmax, no cmp+select.
    return jnp.maximum(v, LEAKY_SLOPE * v)


def _pad2(a, rows, cols):
    r, c = a.shape
    return jnp.pad(a, ((0, rows - r), (0, cols - c)))


# ------------------------------ fused kernel ------------------------------- #

def _make_fused_kernel(n_passive):
    """Folded (bottom Linear + top layer 1) + top layers 2/3, fully fused.

    Ref order: x, U[0..n-1], W_eff, W1u[0..n-1], b_eff, W2, b2, W3, b3, out.
    All feature dims are zero-padded to lane multiples by the wrapper; padded
    lanes stay exactly zero through max(v, 0.01*v), so the output store is
    lane-dense and exact.
    """

    def kernel(*refs):
        x_ref = refs[0]
        u_refs = refs[1:1 + n_passive]
        i = 1 + n_passive
        weff_ref = refs[i]
        i += 1
        w1u_refs = refs[i:i + n_passive]
        i += n_passive
        beff_ref, w2_ref, b2_ref, w3_ref, b3_ref, o_ref = refs[i:i + 6]

        # layer 1 (bottom Linear folded in; split-K absorbs the concat).
        h1 = jnp.dot(x_ref[...], weff_ref[...], preferred_element_type=jnp.float32)
        for j in range(n_passive):
            h1 = h1 + jnp.dot(
                u_refs[j][...], w1u_refs[j][...], preferred_element_type=jnp.float32
            )
        h1 = _leaky(h1 + beff_ref[...])

        # layers 2 & 3 (tiny; f32 weights kept for accuracy, negligible traffic).
        h2 = _leaky(
            jnp.dot(h1, w2_ref[...], preferred_element_type=jnp.float32) + b2_ref[...]
        )
        o_ref[...] = (
            jnp.dot(h2, w3_ref[...], preferred_element_type=jnp.float32) + b3_ref[...]
        )

    return kernel


# ----------------------- parameter init / packing -------------------------- #

def init_linear_params(key, in_dim, out_dim):
    """PyTorch nn.Linear default init (kaiming_uniform_(a=sqrt(5)) -> bound
    1/sqrt(fan_in); bias U(-bound, bound)).  Weight stored transposed (in, out)
    so the kernel computes x @ W + b."""
    kw, kb = jax.random.split(key)
    bound = 1.0 / math.sqrt(in_dim)
    w = jax.random.uniform(kw, (in_dim, out_dim), jnp.float32, -bound, bound)
    b = jax.random.uniform(kb, (1, out_dim), jnp.float32, -bound, bound)
    return w, b


def init_active_model(key, input_dim, output_dim, k=2):
    k0, k1, k2, k3 = jax.random.split(key, 4)
    return {
        "bottom": init_linear_params(k0, input_dim, BOTTOM_DIM),
        "top1": init_linear_params(k1, BOTTOM_DIM * k, H1_DIM),
        "top2": init_linear_params(k2, H1_DIM, H2_DIM),
        "top3": init_linear_params(k3, H2_DIM, output_dim),
    }


def pack_params(params):
    """One-time weight prep (hoisted out of the forward path):
      * fold the activation-free bottom Linear into top layer 1,
      * zero-pad feature dims to lane multiples,
      * cast the streamed-matmul weights to bf16 (layer 2/3 stay f32)."""
    wb, bb = params["bottom"]            # (in_dim, 300), (1, 300)
    w1, b1 = params["top1"]              # (300*k, 100), (1, 100)
    w2, b2 = params["top2"]              # (100, 10),   (1, 10)
    w3, b3 = params["top3"]              # (10, out),   (1, out)

    total_in = w1.shape[0]
    if total_in % BOTTOM_DIM != 0:
        raise ValueError(f"top1 input dim {total_in} is not a multiple of {BOTTOM_DIM}")
    n_passive = total_in // BOTTOM_DIM - 1   # == k - 1

    # Fold: h1 = (x@Wb + bb) @ W1a + ...  ==  x @ (Wb@W1a) + (bb@W1a + b1) + ...
    w1a = w1[:BOTTOM_DIM]
    w_eff = wb.astype(jnp.float32) @ w1a             # (in_dim, 100)
    b_eff = bb.astype(jnp.float32) @ w1a + b1        # (1, 100)

    h1p = _round_up(H1_DIM, LANE)        # 128
    h2p = _round_up(H2_DIM, LANE)        # 128
    output_dim = w3.shape[1]
    out_pad = _round_up(output_dim, LANE)

    return {
        "n_passive": n_passive,
        "output_dim": output_dim,
        "out_pad": out_pad,
        "w_eff": _pad2(w_eff, w_eff.shape[0], h1p).astype(jnp.bfloat16),
        # W1 blocks acting on each passive-party embedding; rows padded 300->384
        # so the split-K matmul and the U tiles are lane-dense.
        "w1u": [
            _pad2(w1[BOTTOM_DIM * (j + 1): BOTTOM_DIM * (j + 2)], U_PAD, h1p
                  ).astype(jnp.bfloat16)
            for j in range(n_passive)
        ],
        "b_eff": _pad2(b_eff, 1, h1p),               # f32
        "w2": _pad2(w2, h1p, h2p),                   # f32 (tiny)
        "b2": _pad2(b2, 1, h2p),
        "w3": _pad2(w3, h2p, out_pad),
        "b3": _pad2(b3, 1, out_pad),
    }


# ------------------------------ tile selection ------------------------------ #

def _choose_tm(batch):
    """Batch tile: multiple of 8, capped at 512.  Balances per-grid-step
    overhead against batch-padding waste, and prefers >=2 tiles so both v7x
    TensorCores get work via dimension_semantics=('parallel',)."""
    b8 = _round_up(max(batch, 1), 8)
    best_tm, best_cost = min(b8, 512), None
    for tm in _TM_CANDIDATES:
        if tm > b8:
            break
        n_tiles = -(-b8 // tm)
        cost = n_tiles * tm + n_tiles * _STEP_OVERHEAD_ROWS
        if n_tiles == 1:
            cost += tm       # a single tile leaves one v7x TensorCore idle
        if best_cost is None or cost < best_cost:
            best_cost, best_tm = cost, tm
    return best_tm


# ------------------------------ forward pass -------------------------------- #

def active_model_forward(packed, x, U_B):
    """Pallas equivalent of active_model.forward(input, U_B).

    `packed` comes from pack_params (called once per parameter set).  Wrap this
    function (with `packed` closed over) in jax.jit for production use."""
    n_passive = packed["n_passive"]
    output_dim = packed["output_dim"]
    out_pad = packed["out_pad"]

    U_list = [] if U_B is None else list(U_B)
    if len(U_list) != n_passive:
        raise ValueError(
            f"got {len(U_list)} passive embeddings, model was built for {n_passive}"
        )

    x = jnp.asarray(x)
    B, in_dim = x.shape

    TM = _choose_tm(B)
    Bp = _round_up(B, TM)

    # bf16 streamed operands; batch rows and U lanes zero-padded (zeros are
    # exact through every matmul and LeakyReLU).
    xb = jnp.pad(x.astype(jnp.bfloat16), ((0, Bp - B), (0, 0)))
    Ub = [
        jnp.pad(jnp.asarray(u).astype(jnp.bfloat16),
                ((0, Bp - B), (0, U_PAD - u.shape[1])))
        for u in U_list
    ]

    weight_args = (
        [packed["w_eff"]] + list(packed["w1u"])
        + [packed["b_eff"], packed["w2"], packed["b2"], packed["w3"], packed["b3"]]
    )
    args = [xb] + Ub + weight_args

    def tile_map(i):
        return (i, 0)

    def const_map(i):
        return (0, 0)   # weights: same block every step -> stay VMEM-resident

    in_specs = [pl.BlockSpec((TM, in_dim), tile_map)]
    in_specs += [pl.BlockSpec((TM, U_PAD), tile_map) for _ in Ub]
    in_specs += [pl.BlockSpec(w.shape, const_map) for w in weight_args]
    out_specs = pl.BlockSpec((TM, out_pad), tile_map)

    # Advisory cost estimate so XLA schedules around the custom call sensibly.
    flops = 2 * Bp * (
        packed["w_eff"].shape[0] * packed["w_eff"].shape[1]
        + sum(w.shape[0] * w.shape[1] for w in packed["w1u"])
        + packed["w2"].shape[0] * packed["w2"].shape[1]
        + packed["w3"].shape[0] * packed["w3"].shape[1]
    )
    bytes_accessed = (
        sum(int(a.size) * a.dtype.itemsize for a in args) + Bp * out_pad * 4
    )

    out = pl.pallas_call(
        _make_fused_kernel(n_passive),
        out_shape=jax.ShapeDtypeStruct((Bp, out_pad), jnp.float32),
        grid=(Bp // TM,),
        in_specs=in_specs,
        out_specs=out_specs,
        compiler_params=pltpu.CompilerParams(
            dimension_semantics=("parallel",),
        ),
        cost_estimate=pl.CostEstimate(
            flops=int(flops), transcendentals=0, bytes_accessed=int(bytes_accessed)
        ),
    )(*args)

    # Strip batch padding and the lane padding of the logits.
    return out[:B, :output_dim]


# --------------------------- introspection helpers -------------------------- #
# TODO(synk): getLayerOutput/getLayerNum are introspection-only (not part of
# forward).  The fused kernel folds the bottom Linear away, so the bottom
# output is recomputed here in pure JAX when needed.

def get_layer_output(params, x, target_layer):
    if target_layer <= 0:
        return jnp.asarray(x, jnp.float32)
    wb, bb = params["bottom"]
    return jnp.asarray(x, jnp.float32) @ wb + bb


def get_layer_num():
    return 1


# ---------------------------- pure-JAX reference ---------------------------- #

def _reference_forward(params, x, U_B):
    wb, bb = params["bottom"]
    out = x @ wb + bb
    if U_B is not None:
        out = jnp.concatenate([out] + [u for u in U_B], axis=1)
    w1, b1 = params["top1"]
    w2, b2 = params["top2"]
    w3, b3 = params["top3"]
    h = _leaky(out @ w1 + b1)
    h = _leaky(h @ w2 + b2)
    return h @ w3 + b3


# --------------------------------- main ------------------------------------- #

if __name__ == "__main__":
    key = jax.random.PRNGKey(0)
    k_param, k_x, k_u = jax.random.split(key, 3)

    # Small shapes consistent with the module (k=2 => one passive embedding).
    batch = 8
    input_dim = 32
    output_dim = 2
    k = 2

    params = init_active_model(k_param, input_dim, output_dim, k=k)
    packed = pack_params(params)          # hoisted: packing happens ONCE

    x = jax.random.normal(k_x, (batch, input_dim), jnp.float32)
    U_B = [jax.random.normal(k_u, (batch, BOTTOM_DIM), jnp.float32)]  # k-1 parties

    fwd = jax.jit(lambda x_, u_: active_model_forward(packed, x_, u_))
    logits = jax.block_until_ready(fwd(x, U_B))

    ref = _reference_forward(params, x, U_B)
    assert logits.shape == (batch, output_dim), logits.shape
    # bf16 streamed operands / folded layer-1 weights => loosen tolerance vs the
    # pure-f32 reference (observed error ~1e-3 at these magnitudes).
    assert jnp.allclose(logits, ref, atol=2e-2, rtol=2e-2), (
        float(jnp.max(jnp.abs(logits - ref)))
    )

    print("KERNEL_OK")
</pallas_src>

<mosaic_0001>
module attributes {stable_mosaic.version = 11 : i64} {
  func.func @kernel(%arg0: i32, %arg1: memref<8x32xbf16, #tpu.memory_space<vmem>>, %arg2: memref<8x384xbf16, #tpu.memory_space<vmem>>, %arg3: memref<32x128xbf16, #tpu.memory_space<vmem>>, %arg4: memref<384x128xbf16, #tpu.memory_space<vmem>>, %arg5: memref<1x128xf32, #tpu.memory_space<vmem>>, %arg6: memref<128x128xf32, #tpu.memory_space<vmem>>, %arg7: memref<1x128xf32, #tpu.memory_space<vmem>>, %arg8: memref<128x128xf32, #tpu.memory_space<vmem>>, %arg9: memref<1x128xf32, #tpu.memory_space<vmem>>, %arg10: memref<8x128xf32, #tpu.memory_space<vmem>>) attributes {dimension_semantics = [#tpu.dimension_semantics<parallel>], iteration_bounds = array<i64: 1>, scalar_prefetch = 0 : i64, scratch_operands = 0 : i64, tpu.core_type = #tpu.core_type<tc>, window_params = [{transform_indices = @transform_0, window_bounds = array<i64: 8, 32>}, {transform_indices = @transform_1, window_bounds = array<i64: 8, 384>}, {pipeline_mode = #tpu.pipeline_mode<synchronous>, transform_indices = @transform_2, window_bounds = array<i64: 32, 128>}, {pipeline_mode = #tpu.pipeline_mode<synchronous>, transform_indices = @transform_3, window_bounds = array<i64: 384, 128>}, {pipeline_mode = #tpu.pipeline_mode<synchronous>, transform_indices = @transform_4, window_bounds = array<i64: 1, 128>}, {pipeline_mode = #tpu.pipeline_mode<synchronous>, transform_indices = @transform_5, window_bounds = array<i64: 128, 128>}, {pipeline_mode = #tpu.pipeline_mode<synchronous>, transform_indices = @transform_6, window_bounds = array<i64: 1, 128>}, {pipeline_mode = #tpu.pipeline_mode<synchronous>, transform_indices = @transform_7, window_bounds = array<i64: 128, 128>}, {pipeline_mode = #tpu.pipeline_mode<synchronous>, transform_indices = @transform_8, window_bounds = array<i64: 1, 128>}, {transform_indices = @transform_9, window_bounds = array<i64: 8, 128>}]} {
    %c0 = arith.constant 0 : index
    %c0_0 = arith.constant 0 : index
    %0 = vector.load %arg1[%c0, %c0_0] : memref<8x32xbf16, #tpu.memory_space<vmem>>, vector<8x32xbf16>
    %c0_1 = arith.constant 0 : index
    %c0_2 = arith.constant 0 : index
    %1 = vector.load %arg3[%c0_1, %c0_2] : memref<32x128xbf16, #tpu.memory_space<vmem>>, vector<32x128xbf16>
    %cst = arith.constant dense<0.000000e+00> : vector<8x128xf32>
    %2 = tpu.matmul %0, %1, %cst {dimension_numbers = #tpu.dot_dimension_numbers<[1], [0], [0], [1], [0, 0, 1, 1], [], []>} : vector<8x32xbf16>, vector<32x128xbf16>, vector<8x128xf32> -> vector<8x128xf32>
    %c0_3 = arith.constant 0 : index
    %c0_4 = arith.constant 0 : index
    %3 = vector.load %arg2[%c0_3, %c0_4] : memref<8x384xbf16, #tpu.memory_space<vmem>>, vector<8x384xbf16>
    %c0_5 = arith.constant 0 : index
    %c0_6 = arith.constant 0 : index
    %4 = vector.load %arg4[%c0_5, %c0_6] : memref<384x128xbf16, #tpu.memory_space<vmem>>, vector<384x128xbf16>
    %cst_7 = arith.constant dense<0.000000e+00> : vector<8x128xf32>
    %5 = tpu.matmul %3, %4, %cst_7 {dimension_numbers = #tpu.dot_dimension_numbers<[1], [0], [0], [1], [0, 0, 1, 1], [], []>} : vector<8x384xbf16>, vector<384x128xbf16>, vector<8x128xf32> -> vector<8x128xf32>
    %6 = arith.addf %2, %5 : vector<8x128xf32>
    %c0_8 = arith.constant 0 : index
    %c0_9 = arith.constant 0 : index
    %7 = vector.load %arg5[%c0_8, %c0_9] : memref<1x128xf32, #tpu.memory_space<vmem>>, vector<1x128xf32>
    %8 = vector.broadcast %7 : vector<1x128xf32> to vector<8x128xf32>
    %9 = arith.addf %6, %8 : vector<8x128xf32>
    %cst_10 = arith.constant 0.00999999977 : f32
    %10 = vector.broadcast %cst_10 : f32 to vector<8x128xf32>
    %11 = arith.mulf %10, %9 : vector<8x128xf32>
    %12 = arith.maximumf %9, %11 : vector<8x128xf32>
    %c0_11 = arith.constant 0 : index
    %c0_12 = arith.constant 0 : index
    %13 = vector.load %arg6[%c0_11, %c0_12] : memref<128x128xf32, #tpu.memory_space<vmem>>, vector<128x128xf32>
    %cst_13 = arith.constant dense<0.000000e+00> : vector<8x128xf32>
    %14 = tpu.matmul %12, %13, %cst_13 {dimension_numbers = #tpu.dot_dimension_numbers<[1], [0], [0], [1], [0, 0, 1, 1], [], []>} : vector<8x128xf32>, vector<128x128xf32>, vector<8x128xf32> -> vector<8x128xf32>
    %c0_14 = arith.constant 0 : index
    %c0_15 = arith.constant 0 : index
    %15 = vector.load %arg7[%c0_14, %c0_15] : memref<1x128xf32, #tpu.memory_space<vmem>>, vector<1x128xf32>
    %16 = vector.broadcast %15 : vector<1x128xf32> to vector<8x128xf32>
    %17 = arith.addf %14, %16 : vector<8x128xf32>
    %cst_16 = arith.constant 0.00999999977 : f32
    %18 = vector.broadcast %cst_16 : f32 to vector<8x128xf32>
    %19 = arith.mulf %18, %17 : vector<8x128xf32>
    %20 = arith.maximumf %17, %19 : vector<8x128xf32>
    %c0_17 = arith.constant 0 : index
    %c0_18 = arith.constant 0 : index
    %21 = vector.load %arg8[%c0_17, %c0_18] : memref<128x128xf32, #tpu.memory_space<vmem>>, vector<128x128xf32>
    %cst_19 = arith.constant dense<0.000000e+00> : vector<8x128xf32>
    %22 = tpu.matmul %20, %21, %cst_19 {dimension_numbers = #tpu.dot_dimension_numbers<[1], [0], [0], [1], [0, 0, 1, 1], [], []>} : vector<8x128xf32>, vector<128x128xf32>, vector<8x128xf32> -> vector<8x128xf32>
    %c0_20 = arith.constant 0 : index
    %c0_21 = arith.constant 0 : index
    %23 = vector.load %arg9[%c0_20, %c0_21] : memref<1x128xf32, #tpu.memory_space<vmem>>, vector<1x128xf32>
    %24 = vector.broadcast %23 : vector<1x128xf32> to vector<8x128xf32>
    %25 = arith.addf %22, %24 : vector<8x128xf32>
    %c0_22 = arith.constant 0 : index
    %c0_23 = arith.constant 0 : index
    %26 = vector.load %arg10[%c0_22, %c0_23] : memref<8x128xf32, #tpu.memory_space<vmem>>, vector<8x128xf32>
    tpu.vector_store %arg10[%c0_22, %c0_23], %25 {strides = array<i32>} : memref<8x128xf32, #tpu.memory_space<vmem>>, vector<8x128xf32>,
    return
  }
  func.func @transform_0(%arg0: i32) -> (i32, i32) {
    %c0_i32 = arith.constant 0 : i32
    %c0_i32_0 = arith.constant 0 : i32
    return %arg0, %c0_i32 : i32, i32
  }
  func.func @transform_1(%arg0: i32) -> (i32, i32) {
    %c0_i32 = arith.constant 0 : i32
    %c0_i32_0 = arith.constant 0 : i32
    return %arg0, %c0_i32 : i32, i32
  }
  func.func @transform_2(%arg0: i32) -> (i32, i32) {
    %c0_i32 = arith.constant 0 : i32
    %c0_i32_0 = arith.constant 0 : i32
    %c0_i32_1 = arith.constant 0 : i32
    return %c0_i32, %c0_i32_0 : i32, i32
  }
  func.func @transform_3(%arg0: i32) -> (i32, i32) {
    %c0_i32 = arith.constant 0 : i32
    %c0_i32_0 = arith.constant 0 : i32
    %c0_i32_1 = arith.constant 0 : i32
    return %c0_i32, %c0_i32_0 : i32, i32
  }
  func.func @transform_4(%arg0: i32) -> (i32, i32) {
    %c0_i32 = arith.constant 0 : i32
    %c0_i32_0 = arith.constant 0 : i32
    %c0_i32_1 = arith.constant 0 : i32
    return %c0_i32, %c0_i32_0 : i32, i32
  }
  func.func @transform_5(%arg0: i32) -> (i32, i32) {
    %c0_i32 = arith.constant 0 : i32
    %c0_i32_0 = arith.constant 0 : i32
    %c0_i32_1 = arith.constant 0 : i32
    return %c0_i32, %c0_i32_0 : i32, i32
  }
  func.func @transform_6(%arg0: i32) -> (i32, i32) {
    %c0_i32 = arith.constant 0 : i32
    %c0_i32_0 = arith.constant 0 : i32
    %c0_i32_1 = arith.constant 0 : i32
    return %c0_i32, %c0_i32_0 : i32, i32
  }
  func.func @transform_7(%arg0: i32) -> (i32, i32) {
    %c0_i32 = arith.constant 0 : i32
    %c0_i32_0 = arith.constant 0 : i32
    %c0_i32_1 = arith.constant 0 : i32
    return %c0_i32, %c0_i32_0 : i32, i32
  }
  func.func @transform_8(%arg0: i32) -> (i32, i32) {
    %c0_i32 = arith.constant 0 : i32
    %c0_i32_0 = arith.constant 0 : i32
    %c0_i32_1 = arith.constant 0 : i32
    return %c0_i32, %c0_i32_0 : i32, i32
  }
  func.func @transform_9(%arg0: i32) -> (i32, i32) {
    %c0_i32 = arith.constant 0 : i32
    %c0_i32_0 = arith.constant 0 : i32
    return %arg0, %c0_i32 : i32, i32
  }
}

</mosaic_0001>

<llo_original>
// kernel: _lambda_.1
$region0: #{_lambda_.1}
  #allocation0 [shape = 'u32[]', space=smem, size = 0x4, offset = 0x4, fixed_abs, tag = 'smem constant byte address 0x4 - core index']
  #allocation1 [shape = 'u32[144,128]{1,0:T(1,128)}', space=vmem, size = 0x12000, scoped, tag = 'internal scratch']
  %s0 = inlined_call_operand.vmem [shape: bf16[8,32], index: 0, kind: input, shape index: {}]
  %s1 = inlined_call_operand.vmem [shape: bf16[8,384], index: 1, kind: input, shape index: {}]
  %s2 = inlined_call_operand.vmem [shape: bf16[32,128], index: 2, kind: input, shape index: {}]
  %s3 = inlined_call_operand.hbm [shape: bf16[384,128], index: 3, kind: input, shape index: {}]
  %s4 = inlined_call_operand.vmem [shape: f32[1,128], index: 4, kind: input, shape index: {}]
  %s5 = inlined_call_operand.hbm [shape: f32[128,128], index: 5, kind: input, shape index: {}]
  %s6 = inlined_call_operand.vmem [shape: f32[1,128], index: 6, kind: input, shape index: {}]
  %s7 = inlined_call_operand.hbm [shape: f32[128,128], index: 7, kind: input, shape index: {}]
  %s8 = inlined_call_operand.vmem [shape: f32[1,128], index: 8, kind: input, shape index: {}]
  %s9 = inlined_call_operand.vmem [shape: f32[8,128], index: 9, kind: output, shape index: {}]
  %s10 = sld [smem:[#allocation0]]
  $region58: #{_lambda_.1} parent=0
    _
  %s12 = ssub.s32 1, %s10
  %s13 = scalar_select 0, %s12, %s10
  $region1: #{_lambda_.1} parent=0
    #allocation2 [shape = 'u8[98304]{0}', space=vmem, size = 0x18000, scoped, tag = 'input window, operand 3, single buffered']
    #allocation3 [shape = 's32[1]{0}', space=sflag, size = 0x4, scoped, tag = 'scoped memory for _lambda_.1']
    #allocation4 [shape = 'u8[65536]{0}', space=vmem, size = 0x10000, scoped, tag = 'input window, operand 5, single buffered']
    #allocation5 [shape = 's32[1]{0}', space=sflag, size = 0x4, scoped, tag = 'scoped memory for _lambda_.1']
    #allocation6 [shape = 'u8[65536]{0}', space=vmem, size = 0x10000, scoped, tag = 'input window, operand 7, single buffered']
    %14 = vsyncpa [#allocation3], 0
    %15 = vsyncpa [#allocation5], 0
    // Predicated region
    $region2: #{_lambda_.1} parent=1 // pred_check
      _
    $region3: #{_lambda_.1} parent=1 // pred_check_branch
      %17 = sbr.rel (0) target = $region5
    $region4: #{_lambda_.1} parent=1 // pred_region
      _
    $region5: #{_lambda_.1} parent=1 // pred_fallthru
      _
    // Predicated region
    $region6: #{_lambda_.1} parent=1 // pred_check
      _
    $region7: #{_lambda_.1} parent=1 // pred_check_branch
      %19 = sbr.rel (0) target = $region9
    $region8: #{_lambda_.1} parent=1 // pred_region
      _
    $region9: #{_lambda_.1} parent=1 // pred_fallthru
      _
    // Predicated region
    $region10: #{_lambda_.1} parent=1 // pred_check
      _
    $region11: #{_lambda_.1} parent=1 // pred_check_branch
      %21 = sbr.rel (0) target = $region13
    $region12: #{_lambda_.1} parent=1 // pred_region
      _
    $region13: #{_lambda_.1} parent=1 // pred_fallthru
      _
    // Predicated region
    $region14: #{_lambda_.1} parent=1 // pred_check
      _
    $region15: #{_lambda_.1} parent=1 // pred_check_branch
      %23 = sbr.rel (0) target = $region17
    $region16: #{_lambda_.1} parent=1 // pred_region
      %s25 = ssub.s32 3072, 3072
      %26 = vsyncadd [#allocation3], %s25
      %s27 = sshll.u32 [#allocation2], 4
      %s28 = int_to_ptr.vmem [resolvable:$true] %s27
      %33 = dma.hbm_to_vmem [thread:$0]  %s3, 3072, %s28, [#allocation3], 64, 64, 4
    $region17: #{_lambda_.1} parent=1 // pred_fallthru
      _
    // Predicated region
    $region18: #{_lambda_.1} parent=1 // pred_check
      _
    $region19: #{_lambda_.1} parent=1 // pred_check_branch
      %35 = sbr.rel (0) target = $region21
    $region20: #{_lambda_.1} parent=1 // pred_region
      _
    $region21: #{_lambda_.1} parent=1 // pred_fallthru
      _
    // Predicated region
    $region22: #{_lambda_.1} parent=1 // pred_check
      _
    $region23: #{_lambda_.1} parent=1 // pred_check_branch
      %37 = sbr.rel (0) target = $region25
    $region24: #{_lambda_.1} parent=1 // pred_region
      %s39 = ssub.s32 2048, 2048
      %40 = vsyncadd [#allocation5], %s39
      %s41 = sshll.u32 [#allocation4], 4
      %s42 = int_to_ptr.vmem [resolvable:$true] %s41
      %47 = dma.hbm_to_vmem [thread:$0]  %s5, 2048, %s42, [#allocation5], 128, 128, 8
    $region25: #{_lambda_.1} parent=1 // pred_fallthru
      _
    // Predicated region
    $region26: #{_lambda_.1} parent=1 // pred_check
      _
    $region27: #{_lambda_.1} parent=1 // pred_check_branch
      %49 = sbr.rel (0) target = $region29
    $region28: #{_lambda_.1} parent=1 // pred_region
      _
    $region29: #{_lambda_.1} parent=1 // pred_fallthru
      _
    // Predicated region
    $region30: #{_lambda_.1} parent=1 // pred_check
      _
    $region31: #{_lambda_.1} parent=1 // pred_check_branch
      %51 = sbr.rel (0) target = $region33
    $region32: #{_lambda_.1} parent=1 // pred_region
      %s53 = ssub.s32 2048, 2048
      %54 = vsyncadd [#allocation5], %s53
      %s55 = sshll.u32 [#allocation6], 4
      %s56 = int_to_ptr.vmem [resolvable:$true] %s55
      %61 = dma.hbm_to_vmem [thread:$0]  %s7, 2048, %s56, [#allocation5], 128, 128, 8
    $region33: #{_lambda_.1} parent=1 // pred_fallthru
      _
    // Predicated region
    $region34: #{_lambda_.1} parent=1 // pred_check
      _
    $region35: #{_lambda_.1} parent=1 // pred_check_branch
      %63 = sbr.rel (0) target = $region37
    $region36: #{_lambda_.1} parent=1 // pred_region
      _
    $region37: #{_lambda_.1} parent=1 // pred_fallthru
      _
    // Predicated region
    $region38: #{_lambda_.1} parent=1 // pred_check
      _
    $region39: #{_lambda_.1} parent=1 // pred_check_branch
      %65 = sbr.rel (0) target = $region41
    $region40: #{_lambda_.1} parent=1 // pred_region
      %66 = dma.done [#allocation3], 3072
    $region41: #{_lambda_.1} parent=1 // pred_fallthru
      _
    // Predicated region
    $region42: #{_lambda_.1} parent=1 // pred_check
      _
    $region43: #{_lambda_.1} parent=1 // pred_check_branch
      %68 = sbr.rel (0) target = $region45
    $region44: #{_lambda_.1} parent=1 // pred_region
      %69 = dma.done [#allocation5], 2048
    $region45: #{_lambda_.1} parent=1 // pred_fallthru
      _
    // Predicated region
    $region46: #{_lambda_.1} parent=1 // pred_check
      _
    $region47: #{_lambda_.1} parent=1 // pred_check_branch
      %71 = sbr.rel (0) target = $region49
    $region48: #{_lambda_.1} parent=1 // pred_region
      %72 = dma.done [#allocation5], 2048
    $region49: #{_lambda_.1} parent=1 // pred_fallthru
      _
    %v74 = vld [vmem:[%s0] sm:$0xf]
    %v75 = vld [vmem:[%s2] sm:$0xf]
    %v76 = vld [vmem:[%s2 + $0x4] sm:$0xf]
    %v77 = vld [vmem:[%s2 + $0x8] sm:$0xf]
    %v78 = vld [vmem:[%s2 + $0xc] sm:$0xf]
    %v79 = vld [vmem:[%s1] sm:$0xff]
    %v80 = vld [vmem:[%s1 + $0x8] sm:$0xf]
    %v81 = vld [vmem:[#allocation2] sm:$0xf]
    %v82 = vld [vmem:[#allocation2 + $0x4] sm:$0xf]
    %v83 = vld [vmem:[#allocation2 + $0x8] sm:$0xf]
    %v84 = vld [vmem:[#allocation2 + $0xc] sm:$0xf]
    %v85 = vld [vmem:[#allocation2 + $0x10] sm:$0xf]
    %v86 = vld [vmem:[#allocation2 + $0x14] sm:$0xf]
    %v87 = vld [vmem:[#allocation2 + $0x18] sm:$0xf]
    %v88 = vld [vmem:[#allocation2 + $0x1c] sm:$0xf]
    %v89 = vld [vmem:[#allocation2 + $0x20] sm:$0xf]
    %v90 = vld [vmem:[#allocation2 + $0x24] sm:$0xf]
    %v91 = vld [vmem:[#allocation2 + $0x28] sm:$0xf]
    %v92 = vld [vmem:[#allocation2 + $0x2c] sm:$0xf]
    %v93 = vld [vmem:[#allocation2 + $0x30] sm:$0xf]
    %v94 = vld [vmem:[#allocation2 + $0x34] sm:$0xf]
    %v95 = vld [vmem:[#allocation2 + $0x38] sm:$0xf]
    %v96 = vld [vmem:[#allocation2 + $0x3c] sm:$0xf]
    %v97 = vld [vmem:[#allocation2 + $0x40] sm:$0xf]
    %v98 = vld [vmem:[#allocation2 + $0x44] sm:$0xf]
    %v99 = vld [vmem:[#allocation2 + $0x48] sm:$0xf]
    %v100 = vld [vmem:[#allocation2 + $0x4c] sm:$0xf]
    %v101 = vld [vmem:[#allocation2 + $0x50] sm:$0xf]
    %v102 = vld [vmem:[#allocation2 + $0x54] sm:$0xf]
    %v103 = vld [vmem:[#allocation2 + $0x58] sm:$0xf]
    %v104 = vld [vmem:[#allocation2 + $0x5c] sm:$0xf]
    %v105 = vld [vmem:[#allocation2 + $0x60] sm:$0xf]
    %v106 = vld [vmem:[#allocation2 + $0x64] sm:$0xf]
    %v107 = vld [vmem:[#allocation2 + $0x68] sm:$0xf]
    %v108 = vld [vmem:[#allocation2 + $0x6c] sm:$0xf]
    %v109 = vld [vmem:[#allocation2 + $0x70] sm:$0xf]
    %v110 = vld [vmem:[#allocation2 + $0x74] sm:$0xf]
    %v111 = vld [vmem:[#allocation2 + $0x78] sm:$0xf]
    %v112 = vld [vmem:[#allocation2 + $0x7c] sm:$0xf]
    %v113 = vld [vmem:[#allocation2 + $0x80] sm:$0xf]
    %v114 = vld [vmem:[#allocation2 + $0x84] sm:$0xf]
    %v115 = vld [vmem:[#allocation2 + $0x88] sm:$0xf]
    %v116 = vld [vmem:[#allocation2 + $0x8c] sm:$0xf]
    %v117 = vld [vmem:[#allocation2 + $0x90] sm:$0xf]
    %v118 = vld [vmem:[#allocation2 + $0x94] sm:$0xf]
    %v119 = vld [vmem:[#allocation2 + $0x98] sm:$0xf]
    %v120 = vld [vmem:[#allocation2 + $0x9c] sm:$0xf]
    %v121 = vld [vmem:[#allocation2 + $0xa0] sm:$0xf]
    %v122 = vld [vmem:[#allocation2 + $0xa4] sm:$0xf]
    %v123 = vld [vmem:[#allocation2 + $0xa8] sm:$0xf]
    %v124 = vld [vmem:[#allocation2 + $0xac] sm:$0xf]
    %v125 = vld [vmem:[#allocation2 + $0xb0] sm:$0xf]
    %v126 = vld [vmem:[#allocation2 + $0xb4] sm:$0xf]
    %v127 = vld [vmem:[#allocation2 + $0xb8] sm:$0xf]
    %v128 = vld [vmem:[#allocation2 + $0xbc] sm:$0xf]
    %v131 = vunpack.c.l.b16 %v79
    %v132 = vunpack.c.h.b16 %v79
    %v133 = vunpack.c.l.b16 %v80
    %v134 = vpack.c.b16 %v131, %v131
    %v135 = vpack.c.b16 %v132, %v132
    %v136 = vpack.c.b16 %v133, %v133
    %v188 = vunpack.c.l.b16 %v81
    %v189 = vunpack.c.l.b16 %v82
    %v190 = vunpack.c.l.b16 %v83
    %v191 = vunpack.c.l.b16 %v84
    %v192 = vunpack.c.l.b16 %v85
    %v193 = vunpack.c.l.b16 %v86
    %v194 = vunpack.c.l.b16 %v87
    %v195 = vunpack.c.l.b16 %v88
    %v196 = vunpack.c.l.b16 %v89
    %v197 = vunpack.c.l.b16 %v90
    %v198 = vunpack.c.l.b16 %v91
    %v199 = vunpack.c.l.b16 %v92
    %v200 = vunpack.c.l.b16 %v93
    %v201 = vunpack.c.l.b16 %v94
    %v202 = vunpack.c.l.b16 %v95
    %v203 = vunpack.c.l.b16 %v96
    %v204 = vunpack.c.l.b16 %v97
    %v205 = vunpack.c.l.b16 %v98
    %v206 = vunpack.c.l.b16 %v99
    %v207 = vunpack.c.l.b16 %v100
    %v208 = vunpack.c.l.b16 %v101
    %v209 = vunpack.c.l.b16 %v102
    %v210 = vunpack.c.l.b16 %v103
    %v211 = vunpack.c.l.b16 %v104
    %v212 = vunpack.c.l.b16 %v105
    %v213 = vunpack.c.l.b16 %v106
    %v214 = vunpack.c.l.b16 %v107
    %v215 = vunpack.c.l.b16 %v108
    %v216 = vunpack.c.l.b16 %v109
    %v217 = vunpack.c.l.b16 %v110
    %v218 = vunpack.c.l.b16 %v111
    %v219 = vunpack.c.l.b16 %v112
    %v220 = vunpack.c.l.b16 %v113
    %v221 = vunpack.c.l.b16 %v114
    %v222 = vunpack.c.l.b16 %v115
    %v223 = vunpack.c.l.b16 %v116
    %v224 = vunpack.c.l.b16 %v117
    %v225 = vunpack.c.l.b16 %v118
    %v226 = vunpack.c.l.b16 %v119
    %v227 = vunpack.c.l.b16 %v120
    %v228 = vunpack.c.l.b16 %v121
    %v229 = vunpack.c.l.b16 %v122
    %v230 = vunpack.c.l.b16 %v123
    %v231 = vunpack.c.l.b16 %v124
    %v232 = vunpack.c.l.b16 %v125
    %v233 = vunpack.c.l.b16 %v126
    %v234 = vunpack.c.l.b16 %v127
    %v235 = vunpack.c.l.b16 %v128
    %v236 = vpack.c.b16 %v189, %v188
    %v237 = vpack.c.b16 %v191, %v190
    %v238 = vpack.c.b16 %v193, %v192
    %v239 = vpack.c.b16 %v195, %v194
    %v240 = vpack.c.b16 %v197, %v196
    %v241 = vpack.c.b16 %v199, %v198
    %v242 = vpack.c.b16 %v201, %v200
    %v243 = vpack.c.b16 %v203, %v202
    %v244 = vpack.c.b16 %v205, %v204
    %v245 = vpack.c.b16 %v207, %v206
    %v246 = vpack.c.b16 %v209, %v208
    %v247 = vpack.c.b16 %v211, %v210
    %v248 = vpack.c.b16 %v213, %v212
    %v249 = vpack.c.b16 %v215, %v214
    %v250 = vpack.c.b16 %v217, %v216
    %v251 = vpack.c.b16 %v219, %v218
    %v252 = vpack.c.b16 %v221, %v220
    %v253 = vpack.c.b16 %v223, %v222
    %v254 = vpack.c.b16 %v225, %v224
    %v255 = vpack.c.b16 %v227, %v226
    %v256 = vpack.c.b16 %v229, %v228
    %v257 = vpack.c.b16 %v231, %v230
    %v258 = vpack.c.b16 %v233, %v232
    %v259 = vpack.c.b16 %v235, %v234
    %284 = vmatprep.subr.bf16.mxu0 0
    %285 = vmatpush1.bf16.msra.mxu0 %v236
    %286 = vmatprep.subr.bf16.mxu0 0
    %287 = vmatpush1.bf16.msra.mxu0 %v237
    %288 = vmatprep.subr.bf16.mxu0 0
    %289 = vmatpush1.bf16.msra.mxu0 %v238
    %290 = vmatprep.subr.bf16.mxu0 0
    %291 = vmatpush1.bf16.msra.mxu0 %v239
    %292 = vmatprep.subr.bf16.mxu0 0
    %293 = vmatpush1.bf16.msra.mxu0 %v240
    %294 = vmatprep.subr.bf16.mxu0 0
    %295 = vmatpush1.bf16.msra.mxu0 %v241
    %296 = vmatprep.subr.bf16.mxu0 0
    %297 = vmatpush1.bf16.msra.mxu0 %v242
    %298 = vmatprep.subr.bf16.mxu0 0
    %299 = vmatpush1.bf16.msra.mxu0 %v243
    %300 = vmatprep.subr.bf16.mxu0 0
    %301 = vmatpush1.bf16.msra.mxu0 %v244
    %302 = vmatprep.subr.bf16.mxu0 0
    %303 = vmatpush1.bf16.msra.mxu0 %v245
    %304 = vmatprep.subr.bf16.mxu0 0
    %305 = vmatpush1.bf16.msra.mxu0 %v246
    %306 = vmatprep.subr.bf16.mxu0 0
    %307 = vmatpush1.bf16.msra.mxu0 %v247
    %308 = vmatprep.subr.bf16.mxu0 0
    %309 = vmatpush1.bf16.msra.mxu0 %v248
    %310 = vmatprep.subr.bf16.mxu0 0
    %311 = vmatpush1.bf16.msra.mxu0 %v249
    %312 = vmatprep.subr.bf16.mxu0 0
    %313 = vmatpush1.bf16.msra.mxu0 %v250
    %314 = vmatprep.subr.bf16.mxu0 0
    %315 = vmatpush1.bf16.msra.mxu0 %v251
    %316 = vmatprep.mubr.bf16.mxu0 %v135
    %317 = vmatmul.mubr.bf16.gmra.mrb[0].mxu0 %v134
    %v318 = vpop.f32.mrb[0].mxu0
    %v319 = vadd.f32 0.0, %v318
    %v320 = vpop.f32.mrb[0].mxu0
    %v321 = vpop.f32.mrb[0].mxu0
    %v322 = vpop.f32.mrb[0].mxu0
    %323 = vdwg.mxu0
    %324 = vmatprep.subr.bf16.mxu0 0
    %325 = vmatpush1.bf16.msra.mxu0 %v252
    %326 = vmatprep.subr.bf16.mxu0 0
    %327 = vmatpush1.bf16.msra.mxu0 %v253
    %328 = vmatprep.subr.bf16.mxu0 0
    %329 = vmatpush1.bf16.msra.mxu0 %v254
    %330 = vmatprep.subr.bf16.mxu0 0
    %331 = vmatpush1.bf16.msra.mxu0 %v255
    %332 = vmatprep.subr.bf16.mxu0 0
    %333 = vmatpush1.bf16.msra.mxu0 %v256
    %334 = vmatprep.subr.bf16.mxu0 0
    %335 = vmatpush1.bf16.msra.mxu0 %v257
    %336 = vmatprep.subr.bf16.mxu0 0
    %337 = vmatpush1.bf16.msra.mxu0 %v258
    %338 = vmatprep.subr.bf16.mxu0 0
    %339 = vmatpush1.bf16.msra.mxu0 %v259
    %340 = vmatprep.subr.bf16.mxu0 0
    %341 = vmatpush1.bf16.msra.mxu0 0
    %342 = vmatprep.subr.bf16.mxu0 0
    %343 = vmatpush1.bf16.msra.mxu0 0
    %344 = vmatprep.subr.bf16.mxu0 0
    %345 = vmatpush1.bf16.msra.mxu0 0
    %346 = vmatprep.subr.bf16.mxu0 0
    %347 = vmatpush1.bf16.msra.mxu0 0
    %348 = vmatprep.subr.bf16.mxu0 0
    %349 = vmatpush1.bf16.msra.mxu0 0
    %350 = vmatprep.subr.bf16.mxu0 0
    %351 = vmatpush1.bf16.msra.mxu0 0
    %352 = vmatprep.subr.bf16.mxu0 0
    %353 = vmatpush1.bf16.msra.mxu0 0
    %354 = vmatprep.subr.bf16.mxu0 0
    %355 = vmatpush1.bf16.msra.mxu0 0
    %356 = vmatprep.mubr.bf16.mxu0 0
    %357 = vmatmul.mubr.bf16.gmra.mrb[0].mxu0 %v136
    %v358 = vpop.f32.mrb[0].mxu0
    %v359 = vadd.f32 %v319, %v358
    %v360 = vpop.f32.mrb[0].mxu0
    %v361 = vpop.f32.mrb[0].mxu0
    %v362 = vpop.f32.mrb[0].mxu0
    %363 = vdwg.mxu0
    %v368 = vunpack.c.l.b16 %v75
    %v369 = vunpack.c.l.b16 %v76
    %v370 = vunpack.c.l.b16 %v77
    %v371 = vunpack.c.l.b16 %v78
    %v372 = vpack.c.b16 %v369, %v368
    %v373 = vpack.c.b16 %v371, %v370
    %vm376 = vcmask 261120
    %v378 = vsel %vm376, %v74, 0
    %380 = vmatprep.subr.bf16.mxu0 0
    %381 = vmatpush1.bf16.msra.mxu0 %v372
    %382 = vmatprep.subr.bf16.mxu0 0
    %383 = vmatpush1.bf16.msra.mxu0 %v373
    %384 = vmatprep.subr.bf16.mxu0 0
    %385 = vmatpush1.bf16.msra.mxu0 0
    %386 = vmatprep.subr.bf16.mxu0 0
    %387 = vmatpush1.bf16.msra.mxu0 0
    %388 = vmatprep.subr.bf16.mxu0 0
    %389 = vmatpush1.bf16.msra.mxu0 0
    %390 = vmatprep.subr.bf16.mxu0 0
    %391 = vmatpush1.bf16.msra.mxu0 0
    %392 = vmatprep.subr.bf16.mxu0 0
    %393 = vmatpush1.bf16.msra.mxu0 0
    %394 = vmatprep.subr.bf16.mxu0 0
    %395 = vmatpush1.bf16.msra.mxu0 0
    %396 = vmatprep.subr.bf16.mxu0 0
    %397 = vmatpush1.bf16.msra.mxu0 0
    %398 = vmatprep.subr.bf16.mxu0 0
    %399 = vmatpush1.bf16.msra.mxu0 0
    %400 = vmatprep.subr.bf16.mxu0 0
    %401 = vmatpush1.bf16.msra.mxu0 0
    %402 = vmatprep.subr.bf16.mxu0 0
    %403 = vmatpush1.bf16.msra.mxu0 0
    %404 = vmatprep.subr.bf16.mxu0 0
    %405 = vmatpush1.bf16.msra.mxu0 0
    %406 = vmatprep.subr.bf16.mxu0 0
    %407 = vmatpush1.bf16.msra.mxu0 0
    %408 = vmatprep.subr.bf16.mxu0 0
    %409 = vmatpush1.bf16.msra.mxu0 0
    %410 = vmatprep.subr.bf16.mxu0 0
    %411 = vmatpush1.bf16.msra.mxu0 0
    %412 = vmatprep.mubr.bf16.mxu0 0
    %413 = vmatmul.mubr.bf16.gmra.mrb[0].mxu0 %v378
    %v414 = vpop.f32.mrb[0].mxu0
    %v415 = vadd.f32 %v359, %v414
    %v416 = vpop.f32.mrb[0].mxu0
    %v417 = vpop.f32.mrb[0].mxu0
    %v418 = vpop.f32.mrb[0].mxu0
    %419 = vdwg.mxu0
    %v420 = vld [vmem:[%s4] sm:$0x1]
    %v422 = vlaneseq
    %v423 = vshrl.u32 %v422, 7
    %v424 = vsub.s32 0, %v423
    %v425 = vrot.slane %v420, %v424
    %v427 = vadd.f32 %v415, %v425
    %v428 = vmul.f32 %v427, 0.01
    %v429 = vmax.f32 %v427, %v428
    %v430 = vld [vmem:[#allocation4] sm:$0xff]
    %v431 = vld [vmem:[#allocation4 + $0x8] sm:$0xff]
    %v432 = vld [vmem:[#allocation4 + $0x10] sm:$0xff]
    %v433 = vld [vmem:[#allocation4 + $0x18] sm:$0xff]
    %v434 = vld [vmem:[#allocation4 + $0x20] sm:$0xff]
    %v435 = vld [vmem:[#allocation4 + $0x28] sm:$0xff]
    %v436 = vld [vmem:[#allocation4 + $0x30] sm:$0xff]
    %v437 = vld [vmem:[#allocation4 + $0x38] sm:$0xff]
    %v438 = vld [vmem:[#allocation4 + $0x40] sm:$0xff]
    %v439 = vld [vmem:[#allocation4 + $0x48] sm:$0xff]
    %v440 = vld [vmem:[#allocation4 + $0x50] sm:$0xff]
    %v441 = vld [vmem:[#allocation4 + $0x58] sm:$0xff]
    %v442 = vld [vmem:[#allocation4 + $0x60] sm:$0xff]
    %v443 = vld [vmem:[#allocation4 + $0x68] sm:$0xff]
    %v444 = vld [vmem:[#allocation4 + $0x70] sm:$0xff]
    %v445 = vld [vmem:[#allocation4 + $0x78] sm:$0xff]
    %v446 = vld [vmem:[%s6] sm:$0x1]
    %v448 = vlaneseq
    %v449 = vshrl.u32 %v448, 7
    %v450 = vsub.s32 0, %v449
    %v451 = vrot.slane %v446, %v450
    %453 = vmatprep.subr.mxu0 0.0
    %454 = vmatpush1.msra.mxu0 %v430
    %455 = vmatprep.subr.mxu0 0.0
    %456 = vmatpush1.msra.mxu0 %v431
    %457 = vmatprep.subr.mxu0 0.0
    %458 = vmatpush1.msra.mxu0 %v432
    %459 = vmatprep.subr.mxu0 0.0
    %460 = vmatpush1.msra.mxu0 %v433
    %461 = vmatprep.subr.mxu0 0.0
    %462 = vmatpush1.msra.mxu0 %v434
    %463 = vmatprep.subr.mxu0 0.0
    %464 = vmatpush1.msra.mxu0 %v435
    %465 = vmatprep.subr.mxu0 0.0
    %466 = vmatpush1.msra.mxu0 %v436
    %467 = vmatprep.subr.mxu0 0.0
    %468 = vmatpush1.msra.mxu0 %v437
    %469 = vmatprep.subr.mxu0 0.0
    %470 = vmatpush1.msra.mxu0 %v438
    %471 = vmatprep.subr.mxu0 0.0
    %472 = vmatpush1.msra.mxu0 %v439
    %473 = vmatprep.subr.mxu0 0.0
    %474 = vmatpush1.msra.mxu0 %v440
    %475 = vmatprep.subr.mxu0 0.0
    %476 = vmatpush1.msra.mxu0 %v441
    %477 = vmatprep.subr.mxu0 0.0
    %478 = vmatpush1.msra.mxu0 %v442
    %479 = vmatprep.subr.mxu0 0.0
    %480 = vmatpush1.msra.mxu0 %v443
    %481 = vmatprep.subr.mxu0 0.0
    %482 = vmatpush1.msra.mxu0 %v444
    %483 = vmatprep.subr.mxu0 0.0
    %484 = vmatpush1.msra.mxu0 %v445
    %485 = vmatprep.subr.mxu0 0.0
    %486 = vmatpush1.msra.mxu0 0.0
    %487 = vmatprep.subr.mxu0 0.0
    %488 = vmatpush1.msra.mxu0 0.0
    %489 = vmatprep.subr.mxu0 0.0
    %490 = vmatpush1.msra.mxu0 0.0
    %491 = vmatprep.subr.mxu0 0.0
    %492 = vmatpush1.msra.mxu0 0.0
    %493 = vmatprep.subr.mxu0 0.0
    %494 = vmatpush1.msra.mxu0 0.0
    %495 = vmatprep.subr.mxu0 0.0
    %496 = vmatpush1.msra.mxu0 0.0
    %497 = vmatprep.subr.mxu0 0.0
    %498 = vmatpush1.msra.mxu0 0.0
    %499 = vmatprep.subr.mxu0 0.0
    %500 = vmatpush1.msra.mxu0 0.0
    %501 = vmatprep.subr.mxu0 0.0
    %502 = vmatpush1.msra.mxu0 0.0
    %503 = vmatprep.subr.mxu0 0.0
    %504 = vmatpush1.msra.mxu0 0.0
    %505 = vmatprep.subr.mxu0 0.0
    %506 = vmatpush1.msra.mxu0 0.0
    %507 = vmatprep.subr.mxu0 0.0
    %508 = vmatpush1.msra.mxu0 0.0
    %509 = vmatprep.subr.mxu0 0.0
    %510 = vmatpush1.msra.mxu0 0.0
    %511 = vmatprep.subr.mxu0 0.0
    %512 = vmatpush1.msra.mxu0 0.0
    %513 = vmatprep.subr.mxu0 0.0
    %514 = vmatpush1.msra.mxu0 0.0
    %515 = vmatprep.subr.mxu0 0.0
    %516 = vmatpush1.msra.mxu0 0.0
    %517 = vmatprep.mubr.f32.mxu0 0.0
    %518 = vmatmul.mubr.f32.gmra.mrb[0].mxu0 %v429
    %v519 = vpop.f32.mrb[0].mxu0
    %v520 = vadd.f32 %v451, %v519
    %v521 = vpop.f32.mrb[0].mxu0
    %522 = vdwg.mxu0
    %v523 = vmul.f32 %v520, 0.01
    %v524 = vmax.f32 %v520, %v523
    %v525 = vld [vmem:[#allocation6] sm:$0xff]
    %v526 = vld [vmem:[#allocation6 + $0x8] sm:$0xff]
    %v527 = vld [vmem:[#allocation6 + $0x10] sm:$0xff]
    %v528 = vld [vmem:[#allocation6 + $0x18] sm:$0xff]
    %v529 = vld [vmem:[#allocation6 + $0x20] sm:$0xff]
    %v530 = vld [vmem:[#allocation6 + $0x28] sm:$0xff]
    %v531 = vld [vmem:[#allocation6 + $0x30] sm:$0xff]
    %v532 = vld [vmem:[#allocation6 + $0x38] sm:$0xff]
    %v533 = vld [vmem:[#allocation6 + $0x40] sm:$0xff]
    %v534 = vld [vmem:[#allocation6 + $0x48] sm:$0xff]
    %v535 = vld [vmem:[#allocation6 + $0x50] sm:$0xff]
    %v536 = vld [vmem:[#allocation6 + $0x58] sm:$0xff]
    %v537 = vld [vmem:[#allocation6 + $0x60] sm:$0xff]
    %v538 = vld [vmem:[#allocation6 + $0x68] sm:$0xff]
    %v539 = vld [vmem:[#allocation6 + $0x70] sm:$0xff]
    %v540 = vld [vmem:[#allocation6 + $0x78] sm:$0xff]
    %v541 = vld [vmem:[%s8] sm:$0x1]
    %v543 = vlaneseq
    %v544 = vshrl.u32 %v543, 7
    %v545 = vsub.s32 0, %v544
    %v546 = vrot.slane %v541, %v545
    %548 = vmatprep.subr.mxu0 0.0
    %549 = vmatpush1.msra.mxu0 %v525
    %550 = vmatprep.subr.mxu0 0.0
    %551 = vmatpush1.msra.mxu0 %v526
    %552 = vmatprep.subr.mxu0 0.0
    %553 = vmatpush1.msra.mxu0 %v527
    %554 = vmatprep.subr.mxu0 0.0
    %555 = vmatpush1.msra.mxu0 %v528
    %556 = vmatprep.subr.mxu0 0.0
    %557 = vmatpush1.msra.mxu0 %v529
    %558 = vmatprep.subr.mxu0 0.0
    %559 = vmatpush1.msra.mxu0 %v530
    %560 = vmatprep.subr.mxu0 0.0
    %561 = vmatpush1.msra.mxu0 %v531
    %562 = vmatprep.subr.mxu0 0.0
    %563 = vmatpush1.msra.mxu0 %v532
    %564 = vmatprep.subr.mxu0 0.0
    %565 = vmatpush1.msra.mxu0 %v533
    %566 = vmatprep.subr.mxu0 0.0
    %567 = vmatpush1.msra.mxu0 %v534
    %568 = vmatprep.subr.mxu0 0.0
    %569 = vmatpush1.msra.mxu0 %v535
    %570 = vmatprep.subr.mxu0 0.0
    %571 = vmatpush1.msra.mxu0 %v536
    %572 = vmatprep.subr.mxu0 0.0
    %573 = vmatpush1.msra.mxu0 %v537
    %574 = vmatprep.subr.mxu0 0.0
    %575 = vmatpush1.msra.mxu0 %v538
    %576 = vmatprep.subr.mxu0 0.0
    %577 = vmatpush1.msra.mxu0 %v539
    %578 = vmatprep.subr.mxu0 0.0
    %579 = vmatpush1.msra.mxu0 %v540
    %580 = vmatprep.subr.mxu0 0.0
    %581 = vmatpush1.msra.mxu0 0.0
    %582 = vmatprep.subr.mxu0 0.0
    %583 = vmatpush1.msra.mxu0 0.0
    %584 = vmatprep.subr.mxu0 0.0
    %585 = vmatpush1.msra.mxu0 0.0
    %586 = vmatprep.subr.mxu0 0.0
    %587 = vmatpush1.msra.mxu0 0.0
    %588 = vmatprep.subr.mxu0 0.0
    %589 = vmatpush1.msra.mxu0 0.0
    %590 = vmatprep.subr.mxu0 0.0
    %591 = vmatpush1.msra.mxu0 0.0
    %592 = vmatprep.subr.mxu0 0.0
    %593 = vmatpush1.msra.mxu0 0.0
    %594 = vmatprep.subr.mxu0 0.0
    %595 = vmatpush1.msra.mxu0 0.0
    %596 = vmatprep.subr.mxu0 0.0
    %597 = vmatpush1.msra.mxu0 0.0
    %598 = vmatprep.subr.mxu0 0.0
    %599 = vmatpush1.msra.mxu0 0.0
    %600 = vmatprep.subr.mxu0 0.0
    %601 = vmatpush1.msra.mxu0 0.0
    %602 = vmatprep.subr.mxu0 0.0
    %603 = vmatpush1.msra.mxu0 0.0
    %604 = vmatprep.subr.mxu0 0.0
    %605 = vmatpush1.msra.mxu0 0.0
    %606 = vmatprep.subr.mxu0 0.0
    %607 = vmatpush1.msra.mxu0 0.0
    %608 = vmatprep.subr.mxu0 0.0
    %609 = vmatpush1.msra.mxu0 0.0
    %610 = vmatprep.subr.mxu0 0.0
    %611 = vmatpush1.msra.mxu0 0.0
    %612 = vmatprep.mubr.f32.mxu0 0.0
    %613 = vmatmul.mubr.f32.gmra.mrb[0].mxu0 %v524
    %v614 = vpop.f32.mrb[0].mxu0
    %v615 = vadd.f32 %v546, %v614
    %v616 = vpop.f32.mrb[0].mxu0
    %617 = vdwg.mxu0
    %618 = vst [vmem:[%s9] sm:$0xff] %v615
    // Predicated region
    $region50: #{_lambda_.1} parent=1 // pred_check
      _
    $region51: #{_lambda_.1} parent=1 // pred_check_branch
      %620 = sbr.rel (0) target = $region53
    $region52: #{_lambda_.1} parent=1 // pred_region
      _
    $region53: #{_lambda_.1} parent=1 // pred_fallthru
      _
    // Predicated region
    $region54: #{_lambda_.1} parent=1 // pred_check
      _
    $region55: #{_lambda_.1} parent=1 // pred_check_branch
      %622 = sbr.rel (0) target = $region57
    $region56: #{_lambda_.1} parent=1 // pred_region
      _
    $region57: #{_lambda_.1} parent=1 // pred_fallthru
      _
    %623 = vsyncpa [#allocation3], 1
    %624 = vsyncpa [#allocation5], 1

</llo_original>
